<compile_context>
chip_gen: v7x
topology: tpu7x:2x2x1
jax: 0.10.0
libtpu: 0.0.40
codegen_flags: <defaults>
</compile_context>

<pallas_src>
import math
import functools

import jax
import jax.numpy as jnp
import numpy as np
from jax.experimental import pallas as pl
from jax.experimental.pallas import tpu as pltpu


def _to_2tuple(x):
    if isinstance(x, (tuple, list)):
        return tuple(x)
    return (x, x)


def _get_pad_shape(input_h, input_w, kernel_size, stride, dilation):
    kernel_h, kernel_w = kernel_size
    stride_h, stride_w = stride
    dil_h, dil_w = dilation
    output_h = math.ceil(input_h / stride_h)
    output_w = math.ceil(input_w / stride_w)
    pad_h = max((output_h - 1) * stride_h + (kernel_h - 1) * dil_h + 1 - input_h, 0)
    pad_w = max((output_w - 1) * stride_w + (kernel_w - 1) * dil_w + 1 - input_w, 0)
    return pad_h, pad_w


def _pad_kernel(x_ref, o_ref, *, top, left):
    """Pads TILE_NC (H, W) planes into (H_out, W_out) planes.

    Every output element is stored exactly once: the interior is copied from
    the input block and only the (disjoint) zero border strips are filled.
    All offsets/sizes are static Python ints -> static slices, no predication.
    In "corner" mode (top == left == 0) the interior copy is aligned at (0,0).
    """
    tile_nc, h, w = x_ref.shape
    _, h_out, w_out = o_ref.shape
    bottom = h_out - top - h
    right = w_out - left - w
    dt = o_ref.dtype

    if top > 0:                                    # top rows, full width
        o_ref[:, :top, :] = jnp.zeros((tile_nc, top, w_out), dt)
    if bottom > 0:                                 # bottom rows, full width
        o_ref[:, top + h:, :] = jnp.zeros((tile_nc, bottom, w_out), dt)
    if left > 0:                                   # left strip, interior rows
        o_ref[:, top:top + h, :left] = jnp.zeros((tile_nc, h, left), dt)
    if right > 0:                                  # right strip, interior rows
        o_ref[:, top:top + h, left + w:] = jnp.zeros((tile_nc, h, right), dt)
    # Single interior store (the bulk of the output, written exactly once).
    o_ref[:, top:top + h, left:left + w] = x_ref[...]


# Conservative VMEM sizing: 2 (double-buffer) x TILE_NC x (in+out plane bytes)
# stays under this budget -> fits default scoped VMEM on v5e/v6e and leaves
# plenty of headroom on v7x (64 MiB physical VMEM per TensorCore).
_VMEM_TILE_BUDGET_BYTES = 16 * 1024 * 1024
_VMEM_LIMIT_BYTES = 32 * 1024 * 1024


def adaptive_padding(x, kernel_size=1, stride=1, dilation=1, padding="corner"):
    """JAX/Pallas equivalent of AdaptivePadding.forward. x is NCHW."""
    assert padding in ("same", "corner")
    kernel_size = _to_2tuple(kernel_size)
    stride = _to_2tuple(stride)
    dilation = _to_2tuple(dilation)

    n, c, h, w = x.shape
    pad_h, pad_w = _get_pad_shape(h, w, kernel_size, stride, dilation)
    if pad_h == 0 and pad_w == 0:
        return x

    if padding == "corner":
        top, left = 0, 0
    else:  # "same": left = pad//2, right = pad - pad//2 (same for h)
        top, left = pad_h // 2, pad_w // 2

    h_out, w_out = h + pad_h, w + pad_w
    nc = n * c
    x_flat = x.reshape(nc, h, w)          # contiguous -> free reshape

    # Aggregate as many (H, W) planes per grid step as the VMEM budget allows
    # (amortizes per-step overhead, long contiguous DMAs), but keep >= 2 grid
    # steps so both TensorCores get work on megacore parts (v7x).
    itemsize = jnp.dtype(x.dtype).itemsize
    bytes_per_plane = (h * w + h_out * w_out) * itemsize
    tile_nc = max(1, _VMEM_TILE_BUDGET_BYTES // (2 * bytes_per_plane))
    tile_nc = min(tile_nc, nc)
    if nc > 1:
        tile_nc = min(tile_nc, pl.cdiv(nc, 2))
    num_tiles = pl.cdiv(nc, tile_nc)

    kernel = functools.partial(_pad_kernel, top=top, left=left)

    out_flat = pl.pallas_call(
        kernel,
        out_shape=jax.ShapeDtypeStruct((nc, h_out, w_out), x.dtype),
        grid=(num_tiles,),
        # Blocks cover the full (H, W) / (H_out, W_out) planes (legal since
        # they equal the full array dims); only the NC axis is tiled, so the
        # HBM-side DMAs are fully contiguous.
        in_specs=[pl.BlockSpec((tile_nc, h, w), lambda i: (i, 0, 0))],
        out_specs=pl.BlockSpec((tile_nc, h_out, w_out), lambda i: (i, 0, 0)),
        compiler_params=pltpu.CompilerParams(
            dimension_semantics=("parallel",),
            vmem_limit_bytes=_VMEM_LIMIT_BYTES),
    )(x_flat)

    return out_flat.reshape(n, c, h_out, w_out)


def _reference_pad(x, kernel_size, stride, dilation, padding):
    kernel_size = _to_2tuple(kernel_size)
    stride = _to_2tuple(stride)
    dilation = _to_2tuple(dilation)
    n, c, h, w = x.shape
    pad_h, pad_w = _get_pad_shape(h, w, kernel_size, stride, dilation)
    if pad_h == 0 and pad_w == 0:
        return x
    if padding == "corner":
        pads = ((0, 0), (0, 0), (0, pad_h), (0, pad_w))
    else:
        pads = ((0, 0), (0, 0),
                (pad_h // 2, pad_h - pad_h // 2),
                (pad_w // 2, pad_w - pad_w // 2))
    return jnp.pad(x, pads)


if __name__ == "__main__":
    key = jax.random.PRNGKey(0)
    # Docstring example geometry: kernel=stride=16, 15x17 spatial
    # -> padded to 16x32 (corner mode pads bottom/right).
    x = jax.random.normal(key, (2, 4, 15, 17), dtype=jnp.float32)

    out_corner = adaptive_padding(x, kernel_size=16, stride=16, dilation=1,
                                  padding="corner")
    out_corner = jax.block_until_ready(out_corner)
    ref_corner = _reference_pad(x, 16, 16, 1, "corner")
    assert out_corner.shape == (2, 4, 16, 32), out_corner.shape
    np.testing.assert_allclose(np.asarray(out_corner), np.asarray(ref_corner),
                               rtol=0, atol=0)

    out_same = adaptive_padding(x, kernel_size=16, stride=16, dilation=1,
                                padding="same")
    out_same = jax.block_until_ready(out_same)
    ref_same = _reference_pad(x, 16, 16, 1, "same")
    assert out_same.shape == (2, 4, 16, 32), out_same.shape
    np.testing.assert_allclose(np.asarray(out_same), np.asarray(ref_same),
                               rtol=0, atol=0)

    # Non-divisible N*C (9 planes -> blocks of 5 + remainder of 4).
    x3 = jax.random.normal(jax.random.PRNGKey(2), (3, 3, 15, 17), jnp.float32)
    out3 = adaptive_padding(x3, kernel_size=16, stride=16, dilation=1,
                            padding="corner")
    out3 = jax.block_until_ready(out3)
    ref3 = _reference_pad(x3, 16, 16, 1, "corner")
    assert out3.shape == (3, 3, 16, 32), out3.shape
    np.testing.assert_allclose(np.asarray(out3), np.asarray(ref3),
                               rtol=0, atol=0)

    # No-pad case should return the input unchanged.
    x2 = jax.random.normal(jax.random.PRNGKey(1), (2, 4, 16, 16), jnp.float32)
    out_nopad = adaptive_padding(x2, kernel_size=16, stride=16, dilation=1,
                                 padding="corner")
    assert out_nopad.shape == x2.shape
    np.testing.assert_allclose(np.asarray(out_nopad), np.asarray(x2),
                               rtol=0, atol=0)

    print("KERNEL_OK")
</pallas_src>

<mosaic_0001>
module attributes {stable_mosaic.version = 11 : i64} {
  func.func @_pad_kernel(%arg0: i32, %arg1: memref<4x15x17xf32, #tpu.memory_space<vmem>>, %arg2: memref<4x16x32xf32, #tpu.memory_space<vmem>>) attributes {dimension_semantics = [#tpu.dimension_semantics<parallel>], iteration_bounds = array<i64: 2>, scalar_prefetch = 0 : i64, scratch_operands = 0 : i64, tpu.core_type = #tpu.core_type<tc>, window_params = [{transform_indices = @transform_0, window_bounds = array<i64: 4, 15, 17>}, {transform_indices = @transform_1, window_bounds = array<i64: 4, 16, 32>}]} {
    %cst = arith.constant 0.000000e+00 : f32
    %0 = vector.broadcast %cst : f32 to vector<4x1x32xf32>
    %c0 = arith.constant 0 : index
    %c15 = arith.constant 15 : index
    %c0_0 = arith.constant 0 : index
    %1 = vector.load %arg2[%c0, %c15, %c0_0] : memref<4x16x32xf32, #tpu.memory_space<vmem>>, vector<4x1x32xf32>
    tpu.vector_store %arg2[%c0, %c15, %c0_0], %0 {strides = array<i32>} : memref<4x16x32xf32, #tpu.memory_space<vmem>>, vector<4x1x32xf32>,
    %cst_1 = arith.constant 0.000000e+00 : f32
    %2 = vector.broadcast %cst_1 : f32 to vector<4x15x15xf32>
    %c0_2 = arith.constant 0 : index
    %c0_3 = arith.constant 0 : index
    %c17 = arith.constant 17 : index
    %3 = vector.load %arg2[%c0_2, %c0_3, %c17] : memref<4x16x32xf32, #tpu.memory_space<vmem>>, vector<4x15x15xf32>
    tpu.vector_store %arg2[%c0_2, %c0_3, %c17], %2 {strides = array<i32>} : memref<4x16x32xf32, #tpu.memory_space<vmem>>, vector<4x15x15xf32>,
    %c0_4 = arith.constant 0 : index
    %c0_5 = arith.constant 0 : index
    %c0_6 = arith.constant 0 : index
    %4 = vector.load %arg1[%c0_4, %c0_5, %c0_6] : memref<4x15x17xf32, #tpu.memory_space<vmem>>, vector<4x15x17xf32>
    %c0_7 = arith.constant 0 : index
    %c0_8 = arith.constant 0 : index
    %c0_9 = arith.constant 0 : index
    %5 = vector.load %arg2[%c0_7, %c0_8, %c0_9] : memref<4x16x32xf32, #tpu.memory_space<vmem>>, vector<4x15x17xf32>
    tpu.vector_store %arg2[%c0_7, %c0_8, %c0_9], %4 {strides = array<i32>} : memref<4x16x32xf32, #tpu.memory_space<vmem>>, vector<4x15x17xf32>,
    return
  }
  func.func @transform_0(%arg0: i32) -> (i32, i32, i32) {
    %c0_i32 = arith.constant 0 : i32
    %c0_i32_0 = arith.constant 0 : i32
    %c0_i32_1 = arith.constant 0 : i32
    return %arg0, %c0_i32, %c0_i32_0 : i32, i32, i32
  }
  func.func @transform_1(%arg0: i32) -> (i32, i32, i32) {
    %c0_i32 = arith.constant 0 : i32
    %c0_i32_0 = arith.constant 0 : i32
    %c0_i32_1 = arith.constant 0 : i32
    return %arg0, %c0_i32, %c0_i32_0 : i32, i32, i32
  }
}

</mosaic_0001>

<llo_original>
// kernel: tpu_custom_call.1
$region0: #{tpu_custom_call.1}
  #allocation0 [shape = 'u32[]', space=smem, size = 0x4, offset = 0x4, fixed_abs, tag = 'smem constant byte address 0x4 - core index']
  #allocation1 [shape = 'u32[144,128]{1,0:T(1,128)}', space=vmem, size = 0x12000, scoped, tag = 'internal scratch']
  %s0 = inlined_call_operand.vmem [shape: f32[8,15,17], index: 0, kind: input, shape index: {}]
  %s1 = inlined_call_operand.hbm [shape: f32[8,16,32], index: 1, kind: output, shape index: {}]
  %s2 = sld [smem:[#allocation0]]
  $region37: #{tpu_custom_call.1} parent=0
    _
  %s4 = ssub.s32 1, %s2
  %s5 = scalar_select 0, %s4, %s2
  $region1: #{tpu_custom_call.1} parent=0
    #allocation2 [shape = 'u8[65536]{0}', space=vmem, size = 0x10000, scoped, tag = 'output window, operand 0']
    #allocation3 [shape = 's32[2]{0}', space=sflag, size = 0x8, scoped, tag = 'scoped memory for tpu_custom_call.1']
    %6 = vsyncpa [#allocation3], 0
    %s7 = scalar_lea.sflag [#allocation3], 1
    %8 = vsyncpa %s7, 0
    loop: start=0, step=1, limit=4
    $region2: #{tpu_custom_call.1} parent=1 // loop_pre_header
      _
    $region3: #{tpu_custom_call.1} parent=1 // loop_header
      %s10 = sphi 0, %s14
      %p11 = scmp.ge.s32.totalorder %s10, 4
      %s20 = sphi 0, %s22
      %s23 = sphi 0, %s20
      %s24 = sphi 0, %s23
      %s40 = sphi 0, %s24
      %s46 = sphi 0, %s48
      %s49 = sphi 0, %s46
      %s50 = sphi 0, %s49
      %s66 = sphi 0, %s50
    $region4: #{tpu_custom_call.1} parent=1 // loop_header_branch
      %13 = sbr.rel (%p11) target = $region8
    $region5: #{tpu_custom_call.1} parent=1 // loop_body
      %s15 = ssub.s32 %s10, 1
      %s16 = ssub.s32 %s10, 2
      %s17 = sadd.s32 %s10, 1
      %s18 = ssub.s32 %s10, %s17
      %p19 = scmp.eq.s32.totalorder %s18, 0
      %s21 = sadd.s32 %s20, 1
      %s22 = scalar_select %p19, %s20, %s21
      %p25 = pneg %p19
      %p26 = scmp.eq.s32.totalorder %s10, 1
      %p27 = por %p25, %p26
      %p28 = scmp.ne.s32.totalorder %s20, %s23
      %p29 = scmp.eq.s32.totalorder %s10, 0
      %p30 = por %p28, %p29
      %p31 = scmp.ne.s32.totalorder %s20, %s23
      %p32 = scmp.eq.s32.totalorder %s15, 1
      %p33 = por %p31, %p32
      %p34 = scmp.ne.s32.totalorder %s23, %s24
      %p35 = scmp.eq.s32.totalorder %s15, 0
      %p36 = por %p34, %p35
      %p37 = scmp.ne.s32.totalorder %s23, %s24
      %p38 = scmp.eq.s32.totalorder %s16, 1
      %p39 = por %p37, %p38
      %p41 = scmp.ne.s32.totalorder %s24, %s40
      %p42 = scmp.eq.s32.totalorder %s16, 0
      %p43 = por %p41, %p42
      %s44 = ssub.s32 %s10, %s17
      %p45 = scmp.eq.s32.totalorder %s44, 0
      %s47 = sadd.s32 %s46, 1
      %s48 = scalar_select %p45, %s46, %s47
      %p51 = pneg %p45
      %p52 = scmp.eq.s32.totalorder %s10, 1
      %p53 = por %p51, %p52
      %p54 = scmp.ne.s32.totalorder %s46, %s49
      %p55 = scmp.eq.s32.totalorder %s10, 0
      %p56 = por %p54, %p55
      %p57 = scmp.ne.s32.totalorder %s46, %s49
      %p58 = scmp.eq.s32.totalorder %s15, 1
      %p59 = por %p57, %p58
      %p60 = scmp.ne.s32.totalorder %s49, %s50
      %p61 = scmp.eq.s32.totalorder %s15, 0
      %p62 = por %p60, %p61
      %p63 = scmp.ne.s32.totalorder %s49, %s50
      %p64 = scmp.eq.s32.totalorder %s16, 1
      %p65 = por %p63, %p64
      %p67 = scmp.ne.s32.totalorder %s50, %s66
      %p68 = scmp.eq.s32.totalorder %s16, 0
      %p69 = por %p67, %p68
      %p70 = scmp.le.s32.totalorder 1, %s10
      %p71 = scmp.lt.s32.totalorder %s10, 3
      %p72 = pnand %p70, %p71
      %p73 = pneg %p72
      // Predicated region
      $region9: #{tpu_custom_call.1} parent=5 // pred_check
        _
      $region10: #{tpu_custom_call.1} parent=5 // pred_check_branch
        %75 = sbr.rel (%p72) target = $region12
      $region11: #{tpu_custom_call.1} parent=5 // pred_region
        %s76 = ssub.s32 %s10, 1
      $region12: #{tpu_custom_call.1} parent=5 // pred_fallthru
        _
      %p77 = scmp.lt.s32.totalorder %s10, 2
      // Predicated region
      $region13: #{tpu_custom_call.1} parent=5 // pred_check
        %p78 = pneg %p77
      $region14: #{tpu_custom_call.1} parent=5 // pred_check_branch
        %80 = sbr.rel (%p78) target = $region16
      $region15: #{tpu_custom_call.1} parent=5 // pred_region
        // Predicated region
        $region17: #{tpu_custom_call.1} parent=15 // pred_check
          %p81 = pneg %p30
        $region18: #{tpu_custom_call.1} parent=15 // pred_check_branch
          %83 = sbr.rel (%p81) target = $region20
        $region19: #{tpu_custom_call.1} parent=15 // pred_region
          %s84 = smul.u32 4, %s10
          %p85 = scmp.lt.s32.totalorder %s84, 7
          %s86 = scalar_select %p85, %s84, 7
          %s87 = smul.addr %s86, 2
          %s88 = smul.addr %s87, 8
          %s89 = scalar_lea.vmem %s0, %s88
          %s90 = smul.u32 4, %s10
        $region20: #{tpu_custom_call.1} parent=15 // pred_fallthru
          _
      $region16: #{tpu_custom_call.1} parent=5 // pred_fallthru
        _
      %p91 = scmp.le.s32.totalorder 1, %s10
      %p92 = scmp.lt.s32.totalorder %s10, 3
      %p93 = pnand %p91, %p92
      %p94 = pneg %p93
      // Predicated region
      $region21: #{tpu_custom_call.1} parent=5 // pred_check
        _
      $region22: #{tpu_custom_call.1} parent=5 // pred_check_branch
        %96 = sbr.rel (%p93) target = $region24
      $region23: #{tpu_custom_call.1} parent=5 // pred_region
        %s97 = ssub.s32 %s10, 1
        %s98 = smul.u32 4, %s15
        %p99 = scmp.lt.s32.totalorder %s98, 7
        %s100 = scalar_select %p99, %s98, 7
        %s101 = smul.addr %s100, 2
        %s102 = smul.addr %s101, 8
        %s103 = scalar_lea.vmem %s0, %s102
        %p104 = pneg %p36
        %p105 = pneg %p33
        %p106 = pneg %p62
        %p107 = pneg %p59
        %s108 = sand.u32 %s49, 1
        %s109 = scalar_lea.sflag [#allocation3], %s108
        %s110 = sand.u32 %s49, 1
        %s111 = smul.addr %s110, 64
        %s112 = scalar_lea.vmem [#allocation2], %s111
        %s113 = smul.u32 4, %s15
        %p114 = scmp.lt.s32.totalorder %s113, 7
        %s115 = scalar_select %p114, %s113, 7
        %s116 = smul.addr %s115, 2
        %s117 = smul.addr %s116, 8
        %s118 = scalar_lea.vmem %s0, %s117
        %s119 = smul.u32 4, %s15
        %s120 = smul.u32 4, %s15
        %vm121 = vcmask 253952
        %122 = vst.msk [vmem:[%s112 + $0xf] sm:$0x1] %vm121, 0.0
        %123 = vst.msk [vmem:[%s112 + $0x1f] sm:$0x1] %vm121, 0.0
        %124 = vst.msk [vmem:[%s112 + $0x2f] sm:$0x1] %vm121, 0.0
        %125 = vst.msk [vmem:[%s112 + $0x3f] sm:$0x1] %vm121, 0.0
        %vm126 = vcmask 261256
        %127 = vst.msk [vmem:[%s112] sm:$0xff] %vm126, 0.0
        %vm128 = vcmask 260232
        %129 = vst.msk [vmem:[%s112 + $0x8] sm:$0x7f] %vm128, 0.0
        %130 = vst.msk [vmem:[%s112 + $0x10] sm:$0xff] %vm126, 0.0
        %131 = vst.msk [vmem:[%s112 + $0x18] sm:$0x7f] %vm128, 0.0
        %132 = vst.msk [vmem:[%s112 + $0x20] sm:$0xff] %vm126, 0.0
        %133 = vst.msk [vmem:[%s112 + $0x28] sm:$0x7f] %vm128, 0.0
        %134 = vst.msk [vmem:[%s112 + $0x30] sm:$0xff] %vm126, 0.0
        %135 = vst.msk [vmem:[%s112 + $0x38] sm:$0x7f] %vm128, 0.0
        %v136 = vld [vmem:[%s118] sm:$0xff]
        %v137 = vld [vmem:[%s118 + $0x8] sm:$0x7f]
        %v138 = vld [vmem:[%s118 + $0x10] sm:$0xff]
        %v139 = vld [vmem:[%s118 + $0x18] sm:$0x7f]
        %v140 = vld [vmem:[%s118 + $0x20] sm:$0xff]
        %v141 = vld [vmem:[%s118 + $0x28] sm:$0x7f]
        %v142 = vld [vmem:[%s118 + $0x30] sm:$0xff]
        %v143 = vld [vmem:[%s118 + $0x38] sm:$0x7f]
        %vm144 = vcmask 138240
        %145 = vst.msk [vmem:[%s112] sm:$0xff] %vm144, %v136
        %vm146 = vcmask 137216
        %147 = vst.msk [vmem:[%s112 + $0x8] sm:$0x7f] %vm146, %v137
        %148 = vst.msk [vmem:[%s112 + $0x10] sm:$0xff] %vm144, %v138
        %149 = vst.msk [vmem:[%s112 + $0x18] sm:$0x7f] %vm146, %v139
        %150 = vst.msk [vmem:[%s112 + $0x20] sm:$0xff] %vm144, %v140
        %151 = vst.msk [vmem:[%s112 + $0x28] sm:$0x7f] %vm146, %v141
        %152 = vst.msk [vmem:[%s112 + $0x30] sm:$0xff] %vm144, %v142
        %153 = vst.msk [vmem:[%s112 + $0x38] sm:$0x7f] %vm146, %v143
        %s154 = sand.u32 %s49, 1
        %s155 = scalar_lea.sflag [#allocation3], %s154
        %s156 = sand.u32 %s49, 1
        %s157 = smul.addr %s156, 64
        %s158 = scalar_lea.vmem [#allocation2], %s157
        // Predicated region
        $region25: #{tpu_custom_call.1} parent=23 // pred_check
          %p159 = pneg %p59
        $region26: #{tpu_custom_call.1} parent=23 // pred_check_branch
          %161 = sbr.rel (%p159) target = $region28
        $region27: #{tpu_custom_call.1} parent=23 // pred_region
          %s162 = smul.u32 4, %s15
          %s164 = ssub.s32 1024, 1024
          %165 = vsyncadd %s155, %s164
          %s166 = smul.addr %s162, 2
          %s167 = smul.addr %s166, 128
          %s168 = scalar_lea.hbm %s1, %s167
          %s169 = sshll.u32 %s158, 4
          %s170 = int_to_ptr.vmem [resolvable:$true] %s169
          %175 = dma.vmem_to_hbm [thread:$0]  %s170, 1024, %s168, %s155, 128, 128, 8
        $region28: #{tpu_custom_call.1} parent=23 // pred_fallthru
          _
      $region24: #{tpu_custom_call.1} parent=5 // pred_fallthru
        _
      %p176 = scmp.le.s32.totalorder 2, %s10
      // Predicated region
      $region29: #{tpu_custom_call.1} parent=5 // pred_check
        %p177 = pneg %p176
      $region30: #{tpu_custom_call.1} parent=5 // pred_check_branch
        %179 = sbr.rel (%p177) target = $region32
      $region31: #{tpu_custom_call.1} parent=5 // pred_region
        %s180 = ssub.s32 %s10, 2
        // Predicated region
        $region33: #{tpu_custom_call.1} parent=31 // pred_check
          %p181 = pneg %p65
        $region34: #{tpu_custom_call.1} parent=31 // pred_check_branch
          %183 = sbr.rel (%p181) target = $region36
        $region35: #{tpu_custom_call.1} parent=31 // pred_region
          %s184 = sand.u32 %s50, 1
          %s185 = scalar_lea.sflag [#allocation3], %s184
          %s186 = sand.u32 %s50, 1
          %s187 = smul.addr %s186, 64
          %s188 = scalar_lea.vmem [#allocation2], %s187
          %189 = dma.done %s185, 1024
        $region36: #{tpu_custom_call.1} parent=31 // pred_fallthru
          _
      $region32: #{tpu_custom_call.1} parent=5 // pred_fallthru
        _
    $region6: #{tpu_custom_call.1} parent=1 // loop_footer
      %s14 = sadd.s32 1, %s10
    $region7: #{tpu_custom_call.1} parent=1 // loop_footer_branch
      %9 = sbr.rel target = $region3
    $region8: #{tpu_custom_call.1} parent=1 // loop_exit
      _
    %190 = vsyncpa [#allocation3], 1
    %s191 = scalar_lea.sflag [#allocation3], 1
    %192 = vsyncpa %s191, 1

</llo_original>
